<compile_context>
chip_gen: v7x
topology: tpu7x:2x2x1
jax: 0.10.0
libtpu: 0.0.40
codegen_flags: <defaults>
</compile_context>

<pallas_src>
import math

import jax
import jax.numpy as jnp
import numpy as np
from jax.experimental import pallas as pl
from jax.experimental.pallas import tpu as pltpu


# ---------------------------------------------------------------------------
# Tiling / VMEM planning helpers
# ---------------------------------------------------------------------------
def _physical_vmem_bytes():
    """Per-TensorCore VMEM; falls back to the smallest generation (v7x, 64 MiB)."""
    try:
        info = pltpu.get_tpu_info()
        for name in ("vmem_capacity_bytes", "vmem_bytes", "vmem_size_bytes"):
            v = getattr(info, name, None)
            if v:
                return int(v)
    except Exception:
        pass
    return 64 * 1024 * 1024


def _divisors(n, mult):
    return [d for d in range(mult, n + 1, mult) if n % d == 0]


def _pick_cj(tile_j, tile_i, F, s_item, temp_cap=4 * 1024 * 1024):
    """j-chunk size for the in-kernel reduction: keeps the live chunk temporaries
    (stream-dtype chunk + f32 product + partial sum) under ~temp_cap."""
    for cj in (16, 8, 4, 2, 1):
        if tile_j % cj == 0 and cj * tile_i * F * (s_item + 8) <= temp_cap:
            return cj
    return 1


def _vmem_estimate(F, Op, tile_i, tile_j, cj, s_item, out_item):
    dep_blk = tile_j * tile_i * F * s_item
    adj_blk = tile_i * tile_j * 4
    text_blk = tile_j * F * 4
    out_blk = tile_i * Op * out_item
    w_blk = F * Op * 4
    b_blk = Op * 4
    # Every pipelined block is double-buffered (incl. the constant-index weight /
    # bias; pl.Buffered(1) on those would save F*Op*4 B but is skipped for
    # compile safety).
    pipelined = 2 * (dep_blk + adj_blk + text_blk + out_blk + w_blk + b_blk)
    scratch = tile_i * F * 4 + tile_j * tile_i * 4            # acc + cached adj^T
    temps = cj * tile_i * F * (s_item + 8) + tile_i * F * 4   # chunk product + partial
    return pipelined + scratch + temps


def _plan_tiles(L, F, Op, s_item, out_item, dep_budget, vmem_cap):
    # tile_i is a sublane dim (2nd-to-last dim of the dep/adj blocks): multiple
    # of 16 for a 16-bit stream dtype (sublane packing), else 8 -- or the full L.
    sub = 16 if s_item < 4 else 8
    ti_cands = sorted(set(_divisors(L, sub) + [L]), reverse=True)
    ti_cands = [t for t in ti_cands if t <= 512] or [min(ti_cands)]
    # tile_j is the lane dim of the adj block: multiple of 128, or the full L.
    tj_cands = sorted(set(_divisors(L, 128) + [L]), reverse=True)
    for ti in ti_cands:                       # prefer a large tile_i ...
        for tj in tj_cands:                   # ... then the largest tile_j that fits
            cj = _pick_cj(tj, ti, F, s_item)
            if (tj * ti * F * s_item <= dep_budget
                    and _vmem_estimate(F, Op, ti, tj, cj, s_item, out_item) <= vmem_cap):
                return ti, tj
    return min(ti_cands), min(tj_cands)       # best effort for pathological shapes


# ---------------------------------------------------------------------------
# Kernel + wrapper
# ---------------------------------------------------------------------------
def type_graph_convolution(text, adj, dep_embed, weight, bias=None, *,
                           stream_dtype=jnp.bfloat16, mul_dtype=None,
                           tile_i=None, tile_j=None):
    B, L, F = text.shape
    Fw, O = weight.shape
    assert Fw == F, "weight must be (in_features, out_features)"
    if O != F:
        # The PyTorch forward multiplies an (..., O) tensor elementwise with an
        # (..., F) tensor, so the module only works when O == F.
        raise ValueError("TypeGraphConvolution requires out_features == in_features")
    if bias is None:
        bias = jnp.zeros((O,), jnp.float32)

    stream_dtype = jnp.dtype(stream_dtype)
    if mul_dtype is None:
        # bf16/fp8 multiplies run natively on the v6e/v7x VPU; on v5e (no bf16
        # VALU) pass mul_dtype=jnp.float32 -- the kernel stays HBM-bound anyway.
        mul_dtype = stream_dtype if stream_dtype.itemsize < 4 else jnp.dtype(jnp.float32)
    mul_dtype = jnp.dtype(mul_dtype)

    out_dtype = text.dtype
    s_item = stream_dtype.itemsize
    out_item = jnp.dtype(out_dtype).itemsize

    # Lane-dense weight / bias / output columns.
    Op = -(-O // 128) * 128

    # Per-generation VMEM budget.
    phys = _physical_vmem_bytes()
    headroom = max(8 << 20, phys // 5)           # ~12.8 MiB on v7x, ~25.6 MiB on v5e/v6e
    vmem_cap = max(phys - headroom, 16 << 20)    # ~51 MiB on v7x, ~100 MiB on v5e/v6e
    dep_budget = vmem_cap // 3                   # dep is double-buffered + everything else

    ti_def, tj_def = _plan_tiles(L, F, Op, s_item, out_item, dep_budget, vmem_cap)
    tile_i = int(tile_i) if tile_i is not None else ti_def
    tile_j = int(tile_j) if tile_j is not None else tj_def
    if L % tile_i or L % tile_j:
        raise ValueError("tile_i and tile_j must divide max_len")
    n_i, n_j = L // tile_i, L // tile_j

    cj = _pick_cj(tile_j, tile_i, F, s_item)
    n_chunks = tile_j // cj
    est = _vmem_estimate(F, Op, tile_i, tile_j, cj, s_item, out_item)
    vmem_limit = int(min(max(vmem_cap, est * 5 // 4), max(phys - (4 << 20), 16 << 20)))

    def kernel(text_ref, adj_ref, dep_ref, w_ref, b_ref, out_ref, acc_ref, adjt_ref):
        # Per-step tiles:
        #   text (1, Tj, F)  f32     adj (1, Ti, Tj) f32     dep (1, Tj, Ti, F) stream
        #   w    (F, Op) f32         bias (1, Op) f32        out (1, Ti, Op)
        # Scratch: acc (Ti, F) f32 accumulator over j tiles; adjt (Tj, Ti) f32.
        jt = pl.program_id(2)

        @pl.when(jt == 0)
        def _init():
            acc_ref[...] = jnp.zeros_like(acc_ref)

        adj_t_tile = adj_ref[0]                                 # (Ti, Tj) f32
        # text term on the MXU: (Ti, Tj) @ (Tj, F), f32 accumulate.
        acc_ref[...] += jnp.dot(adj_t_tile, text_ref[0],
                                preferred_element_type=jnp.float32)

        # dep term on the VPU: sum_j adj[i, j] * dep[j, i, :], chunked over j so
        # the live intermediate stays at chunk size (no whole-tile f32 upcast).
        adjt_ref[...] = adj_t_tile.T                            # small in-kernel XLU transpose

        def body(c, carry):
            j0 = pl.multiple_of(c * cj, cj)
            dep_chunk = dep_ref[0, pl.ds(j0, cj), :, :].astype(mul_dtype)   # (cj, Ti, F)
            adj_chunk = adjt_ref[pl.ds(j0, cj), :].astype(mul_dtype)        # (cj, Ti)
            prod = (dep_chunk * adj_chunk[:, :, None]).astype(jnp.float32)
            acc_ref[...] += jnp.sum(prod, axis=0)
            return carry

        jax.lax.fori_loop(0, n_chunks, body, 0, unroll=(n_chunks <= 16))

        @pl.when(jt == pl.num_programs(2) - 1)
        def _finalize():
            out = jnp.dot(acc_ref[...], w_ref[...],
                          preferred_element_type=jnp.float32) + b_ref[...]
            out_ref[0] = jnp.maximum(out, 0.0).astype(out_ref.dtype)

    # Wrapper-side casts / padding (layout plumbing, not compute hoisting).
    text32 = text.astype(jnp.float32)
    adj32 = adj.astype(jnp.float32)
    dep_s = dep_embed.astype(stream_dtype)
    w_pad = weight.astype(jnp.float32)
    b_pad = bias.astype(jnp.float32)
    if Op != O:
        w_pad = jnp.pad(w_pad, ((0, 0), (0, Op - O)))
        b_pad = jnp.pad(b_pad, (0, Op - O))
    b_pad = b_pad.reshape(1, Op)

    out = pl.pallas_call(
        kernel,
        out_shape=jax.ShapeDtypeStruct((B, L, Op), out_dtype),
        grid=(B, n_i, n_j),
        in_specs=[
            pl.BlockSpec((1, tile_j, F), lambda b, it, jt: (b, jt, 0)),           # text rows j
            pl.BlockSpec((1, tile_i, tile_j), lambda b, it, jt: (b, it, jt)),     # adj[i, j]
            pl.BlockSpec((1, tile_j, tile_i, F), lambda b, it, jt: (b, jt, it, 0)),  # dep[j, i, :]
            pl.BlockSpec((F, Op), lambda b, it, jt: (0, 0)),                      # weight
            pl.BlockSpec((1, Op), lambda b, it, jt: (0, 0)),                      # bias
        ],
        out_specs=pl.BlockSpec((1, tile_i, Op), lambda b, it, jt: (b, it, 0)),
        scratch_shapes=[
            pltpu.VMEM((tile_i, F), jnp.float32),       # agg accumulator over j tiles
            pltpu.VMEM((tile_j, tile_i), jnp.float32),  # cached adj^T for dep weighting
        ],
        compiler_params=pltpu.CompilerParams(
            dimension_semantics=("parallel", "parallel", "arbitrary"),
            vmem_limit_bytes=vmem_limit,
        ),
    )(text32, adj32, dep_s, w_pad, b_pad)

    if Op != O:
        out = out[..., :O]
    return out


# ---------------------------------------------------------------------------
# Pure-JAX mirror of the (unrestructured) PyTorch forward, for validation.
# ---------------------------------------------------------------------------
def reference(text, adj, dep_embed, weight, bias):
    val_us = jnp.broadcast_to(text[:, :, None, :], dep_embed.shape)   # (B, L, L, F)
    val_sum = val_us + dep_embed
    hidden = jnp.einsum('bjif,fo->bjio', val_sum, weight,
                        precision=jax.lax.Precision.HIGHEST)
    output = jnp.swapaxes(hidden, 1, 2) * adj[..., None]              # (B, i, j, O)
    output = jnp.sum(output, axis=2) + bias
    return jax.nn.relu(output)


if __name__ == "__main__":
    B, L, F = 2, 8, 32
    O = F  # out_features must equal in_features (see note above)

    key = jax.random.PRNGKey(0)
    k1, k2, k3, k4, k5 = jax.random.split(key, 5)

    text = jax.random.normal(k1, (B, L, F), dtype=jnp.float32)
    adj = (jax.random.uniform(k2, (B, L, L)) < 0.3).astype(jnp.float32)
    dep_embed = 0.1 * jax.random.normal(k3, (B, L, L, F), dtype=jnp.float32)

    # Deterministic parameter init mimicking PyTorch reset_parameters():
    # kaiming_uniform_(a=sqrt(5)) on (in, out) -> U(-1/sqrt(fan_in), 1/sqrt(fan_in)).
    fan_in = O
    bound = 1.0 / math.sqrt(fan_in)
    weight = jax.random.uniform(k4, (F, O), minval=-bound, maxval=bound,
                                dtype=jnp.float32)
    bias = jax.random.uniform(k5, (O,), minval=-bound, maxval=bound,
                              dtype=jnp.float32)

    ref = jax.block_until_ready(reference(text, adj, dep_embed, weight, bias))

    # Exact path: dep streamed and multiplied in f32 (matches the module to
    # f32 accuracy; this is also the recommended v5e elementwise path).
    out_f32 = jax.block_until_ready(
        type_graph_convolution(text, adj, dep_embed, weight, bias,
                               stream_dtype=jnp.float32))
    np.testing.assert_allclose(np.asarray(out_f32), np.asarray(ref),
                               rtol=1e-4, atol=1e-4)

    # Default fast path: dep_embed streamed + multiplied in bf16 (halves the
    # dominant HBM term); accumulation stays f32, so the error is bounded by
    # bf16 input rounding.
    out_bf16 = jax.block_until_ready(
        type_graph_convolution(text, adj, dep_embed, weight, bias))
    np.testing.assert_allclose(np.asarray(out_bf16), np.asarray(ref),
                               rtol=2e-2, atol=2e-2)

    print("KERNEL_OK")
</pallas_src>

<mosaic_0001>
module attributes {stable_mosaic.version = 11 : i64} {
  func.func @kernel(%arg0: i32, %arg1: i32, %arg2: i32, %arg3: memref<1x8x32xf32, #tpu.memory_space<vmem>>, %arg4: memref<1x8x8xf32, #tpu.memory_space<vmem>>, %arg5: memref<1x8x8x32xf32, #tpu.memory_space<vmem>>, %arg6: memref<32x128xf32, #tpu.memory_space<vmem>>, %arg7: memref<1x128xf32, #tpu.memory_space<vmem>>, %arg8: memref<1x8x128xf32, #tpu.memory_space<vmem>>, %arg9: memref<8x32xf32, #tpu.memory_space<vmem>>, %arg10: memref<8x8xf32, #tpu.memory_space<vmem>>) attributes {dimension_semantics = [#tpu.dimension_semantics<parallel>, #tpu.dimension_semantics<parallel>, #tpu.dimension_semantics<arbitrary>], iteration_bounds = array<i64: 2, 1, 1>, scalar_prefetch = 0 : i64, scratch_operands = 2 : i64, tpu.core_type = #tpu.core_type<tc>, window_params = [{transform_indices = @transform_0, window_bounds = array<i64: 1, 8, 32>}, {transform_indices = @transform_1, window_bounds = array<i64: 1, 8, 8>}, {transform_indices = @transform_2, window_bounds = array<i64: 1, 8, 8, 32>}, {pipeline_mode = #tpu.pipeline_mode<synchronous>, transform_indices = @transform_3, window_bounds = array<i64: 32, 128>}, {pipeline_mode = #tpu.pipeline_mode<synchronous>, transform_indices = @transform_4, window_bounds = array<i64: 1, 128>}, {transform_indices = @transform_5, window_bounds = array<i64: 1, 8, 128>}]} {
    %c0_i32 = arith.constant 0 : i32
    %0 = arith.cmpi eq, %arg2, %c0_i32 : i32
    %1 = arith.extui %0 : i1 to i32
    %c0_i32_0 = arith.constant 0 : i32
    %2 = arith.cmpi ne, %1, %c0_i32_0 : i32
    scf.if %2 {
      %cst_24 = arith.constant 0.000000e+00 : f32
      %30 = vector.broadcast %cst_24 : f32 to vector<8x32xf32>
      %c0_25 = arith.constant 0 : index
      %c0_26 = arith.constant 0 : index
      %31 = vector.load %arg9[%c0_25, %c0_26] : memref<8x32xf32, #tpu.memory_space<vmem>>, vector<8x32xf32>
      tpu.vector_store %arg9[%c0_25, %c0_26], %30 {strides = array<i32>} : memref<8x32xf32, #tpu.memory_space<vmem>>, vector<8x32xf32>,
    } else {
    }
    %c0 = arith.constant 0 : index
    %c0_1 = arith.constant 0 : index
    %c0_2 = arith.constant 0 : index
    %3 = vector.load %arg4[%c0, %c0_1, %c0_2] : memref<1x8x8xf32, #tpu.memory_space<vmem>>, vector<1x8x8xf32>
    %4 = vector.shape_cast %3 : vector<1x8x8xf32> to vector<8x8xf32>
    %c0_3 = arith.constant 0 : index
    %c0_4 = arith.constant 0 : index
    %5 = vector.load %arg9[%c0_3, %c0_4] : memref<8x32xf32, #tpu.memory_space<vmem>>, vector<8x32xf32>
    %c0_5 = arith.constant 0 : index
    %c0_6 = arith.constant 0 : index
    %c0_7 = arith.constant 0 : index
    %6 = vector.load %arg3[%c0_5, %c0_6, %c0_7] : memref<1x8x32xf32, #tpu.memory_space<vmem>>, vector<1x8x32xf32>
    %7 = vector.shape_cast %6 : vector<1x8x32xf32> to vector<8x32xf32>
    %cst = arith.constant dense<0.000000e+00> : vector<8x32xf32>
    %8 = tpu.matmul %4, %7, %cst {dimension_numbers = #tpu.dot_dimension_numbers<[1], [0], [0], [1], [0, 0, 1, 1], [], []>} : vector<8x8xf32>, vector<8x32xf32>, vector<8x32xf32> -> vector<8x32xf32>
    %9 = arith.addf %5, %8 : vector<8x32xf32>
    %c0_8 = arith.constant 0 : index
    %c0_9 = arith.constant 0 : index
    %10 = vector.load %arg9[%c0_8, %c0_9] : memref<8x32xf32, #tpu.memory_space<vmem>>, vector<8x32xf32>
    tpu.vector_store %arg9[%c0_8, %c0_9], %9 {strides = array<i32>} : memref<8x32xf32, #tpu.memory_space<vmem>>, vector<8x32xf32>,
    %11 = tpu.transpose %4, [1, 0] : vector<8x8xf32> -> vector<8x8xf32>
    %c0_10 = arith.constant 0 : index
    %c0_11 = arith.constant 0 : index
    %12 = vector.load %arg10[%c0_10, %c0_11] : memref<8x8xf32, #tpu.memory_space<vmem>>, vector<8x8xf32>
    tpu.vector_store %arg10[%c0_10, %c0_11], %11 {strides = array<i32>} : memref<8x8xf32, #tpu.memory_space<vmem>>, vector<8x8xf32>,
    %c0_i32_12 = arith.constant 0 : i32
    %c8_i32 = arith.constant 8 : i32
    %13 = arith.muli %c0_i32_12, %c8_i32 : i32
    %14 = tpu.assume_multiple %13, 8 : i32
    %c0_13 = arith.constant 0 : index
    %15 = arith.index_cast %14 : i32 to index
    %c0_14 = arith.constant 0 : index
    %c0_15 = arith.constant 0 : index
    %16 = vector.load %arg5[%c0_13, %15, %c0_14, %c0_15] : memref<1x8x8x32xf32, #tpu.memory_space<vmem>>, vector<1x8x8x32xf32>
    %17 = vector.shape_cast %16 : vector<1x8x8x32xf32> to vector<8x8x32xf32>
    %18 = arith.index_cast %14 : i32 to index
    %c0_16 = arith.constant 0 : index
    %19 = vector.load %arg10[%18, %c0_16] : memref<8x8xf32, #tpu.memory_space<vmem>>, vector<8x8xf32>
    %20 = vector.shape_cast %19 : vector<8x8xf32> to vector<8x8x1xf32>
    %21 = vector.broadcast %20 : vector<8x8x1xf32> to vector<8x8x32xf32>
    %22 = arith.mulf %17, %21 : vector<8x8x32xf32>
    %c0_17 = arith.constant 0 : index
    %c0_18 = arith.constant 0 : index
    %23 = vector.load %arg9[%c0_17, %c0_18] : memref<8x32xf32, #tpu.memory_space<vmem>>, vector<8x32xf32>
    %cst_19 = arith.constant dense<0.000000e+00> : vector<8x32xf32>
    %24 = vector.multi_reduction <add>, %22, %cst_19 [0] : vector<8x8x32xf32> to vector<8x32xf32>
    %25 = arith.addf %23, %24 : vector<8x32xf32>
    %c0_20 = arith.constant 0 : index
    %c0_21 = arith.constant 0 : index
    %26 = vector.load %arg9[%c0_20, %c0_21] : memref<8x32xf32, #tpu.memory_space<vmem>>, vector<8x32xf32>
    tpu.vector_store %arg9[%c0_20, %c0_21], %25 {strides = array<i32>} : memref<8x32xf32, #tpu.memory_space<vmem>>, vector<8x32xf32>,
    %c1_i32 = arith.constant 1 : i32
    %c0_i32_22 = arith.constant 0 : i32
    %27 = arith.cmpi eq, %arg2, %c0_i32_22 : i32
    %28 = arith.extui %27 : i1 to i32
    %c0_i32_23 = arith.constant 0 : i32
    %29 = arith.cmpi ne, %28, %c0_i32_23 : i32
    scf.if %29 {
      %c0_24 = arith.constant 0 : index
      %c0_25 = arith.constant 0 : index
      %30 = vector.load %arg9[%c0_24, %c0_25] : memref<8x32xf32, #tpu.memory_space<vmem>>, vector<8x32xf32>
      %c0_26 = arith.constant 0 : index
      %c0_27 = arith.constant 0 : index
      %31 = vector.load %arg6[%c0_26, %c0_27] : memref<32x128xf32, #tpu.memory_space<vmem>>, vector<32x128xf32>
      %cst_28 = arith.constant dense<0.000000e+00> : vector<8x128xf32>
      %32 = tpu.matmul %30, %31, %cst_28 {dimension_numbers = #tpu.dot_dimension_numbers<[1], [0], [0], [1], [0, 0, 1, 1], [], []>} : vector<8x32xf32>, vector<32x128xf32>, vector<8x128xf32> -> vector<8x128xf32>
      %c0_29 = arith.constant 0 : index
      %c0_30 = arith.constant 0 : index
      %33 = vector.load %arg7[%c0_29, %c0_30] : memref<1x128xf32, #tpu.memory_space<vmem>>, vector<1x128xf32>
      %34 = vector.broadcast %33 : vector<1x128xf32> to vector<8x128xf32>
      %35 = arith.addf %32, %34 : vector<8x128xf32>
      %cst_31 = arith.constant 0.000000e+00 : f32
      %36 = vector.broadcast %cst_31 : f32 to vector<8x128xf32>
      %37 = arith.maximumf %35, %36 : vector<8x128xf32>
      %c0_32 = arith.constant 0 : index
      %c0_33 = arith.constant 0 : index
      %c0_34 = arith.constant 0 : index
      %38 = vector.load %arg8[%c0_32, %c0_33, %c0_34] : memref<1x8x128xf32, #tpu.memory_space<vmem>>, vector<1x8x128xf32>
      %39 = vector.shape_cast %38 : vector<1x8x128xf32> to vector<8x128xf32>
      %40 = vector.shape_cast %37 : vector<8x128xf32> to vector<1x8x128xf32>
      tpu.vector_store %arg8[%c0_32, %c0_33, %c0_34], %40 {strides = array<i32>} : memref<1x8x128xf32, #tpu.memory_space<vmem>>, vector<1x8x128xf32>,
    } else {
    }
    return
  }
  func.func @transform_0(%arg0: i32, %arg1: i32, %arg2: i32) -> (i32, i32, i32) {
    %c0_i32 = arith.constant 0 : i32
    %c0_i32_0 = arith.constant 0 : i32
    return %arg0, %arg2, %c0_i32 : i32, i32, i32
  }
  func.func @transform_1(%arg0: i32, %arg1: i32, %arg2: i32) -> (i32, i32, i32) {
    %c0_i32 = arith.constant 0 : i32
    return %arg0, %arg1, %arg2 : i32, i32, i32
  }
  func.func @transform_2(%arg0: i32, %arg1: i32, %arg2: i32) -> (i32, i32, i32, i32) {
    %c0_i32 = arith.constant 0 : i32
    %c0_i32_0 = arith.constant 0 : i32
    return %arg0, %arg2, %arg1, %c0_i32 : i32, i32, i32, i32
  }
  func.func @transform_3(%arg0: i32, %arg1: i32, %arg2: i32) -> (i32, i32) {
    %c0_i32 = arith.constant 0 : i32
    %c0_i32_0 = arith.constant 0 : i32
    %c0_i32_1 = arith.constant 0 : i32
    return %c0_i32, %c0_i32_0 : i32, i32
  }
  func.func @transform_4(%arg0: i32, %arg1: i32, %arg2: i32) -> (i32, i32) {
    %c0_i32 = arith.constant 0 : i32
    %c0_i32_0 = arith.constant 0 : i32
    %c0_i32_1 = arith.constant 0 : i32
    return %c0_i32, %c0_i32_0 : i32, i32
  }
  func.func @transform_5(%arg0: i32, %arg1: i32, %arg2: i32) -> (i32, i32, i32) {
    %c0_i32 = arith.constant 0 : i32
    %c0_i32_0 = arith.constant 0 : i32
    return %arg0, %arg1, %c0_i32 : i32, i32, i32
  }
}

</mosaic_0001>

<llo_original>
// kernel: tpu_custom_call.1
$region0: #{tpu_custom_call.1}
  #allocation0 [shape = 'u32[]', space=smem, size = 0x4, offset = 0x4, fixed_abs, tag = 'smem constant byte address 0x4 - core index']
  #allocation1 [shape = 'u32[144,128]{1,0:T(1,128)}', space=vmem, size = 0x12000, scoped, tag = 'internal scratch']
  #allocation2 [shape = 'f32[8,32]{1,0:T(8,128)}', space=vmem, size = 0x1000, scoped, tag = 'scratch operand']
  #allocation3 [shape = 'f32[8,8]{1,0:T(8,128)}', space=vmem, size = 0x1000, scoped, tag = 'scratch operand']
  %s0 = inlined_call_operand.hbm [shape: f32[2,8,32], index: 0, kind: input, shape index: {}]
  %s1 = inlined_call_operand.hbm [shape: f32[2,8,8], index: 1, kind: input, shape index: {}]
  %s2 = inlined_call_operand.hbm [shape: f32[2,8,8,32], index: 2, kind: input, shape index: {}]
  %s3 = inlined_call_operand.hbm [shape: f32[32,128], index: 3, kind: input, shape index: {}]
  %s4 = inlined_call_operand.vmem [shape: f32[1,128], index: 4, kind: input, shape index: {}]
  %s5 = inlined_call_operand.hbm [shape: f32[2,8,128], index: 5, kind: output, shape index: {}]
  %s6 = sld [smem:[#allocation0]]
  $region77: #{tpu_custom_call.1} parent=0
    _
  %s8 = ssub.s32 1, %s6
  %s9 = scalar_select 0, %s8, %s6
  $region1: #{tpu_custom_call.1} parent=0
    #allocation4 [shape = 'u8[8192]{0}', space=vmem, size = 0x2000, scoped, tag = 'input window, operand 0']
    #allocation5 [shape = 's32[2]{0}', space=sflag, size = 0x8, scoped, tag = 'scoped memory for tpu_custom_call.1']
    #allocation6 [shape = 's32[2]{0}', space=sflag, size = 0x8, scoped, tag = 'scoped memory for tpu_custom_call.1']
    #allocation7 [shape = 'u8[8192]{0}', space=vmem, size = 0x2000, scoped, tag = 'input window, operand 1']
    #allocation8 [shape = 's32[2]{0}', space=sflag, size = 0x8, scoped, tag = 'scoped memory for tpu_custom_call.1']
    #allocation9 [shape = 'u8[65536]{0}', space=vmem, size = 0x10000, scoped, tag = 'input window, operand 2']
    #allocation10 [shape = 'u8[16384]{0}', space=vmem, size = 0x4000, scoped, tag = 'input window, operand 3, single buffered']
    #allocation11 [shape = 's32[1]{0}', space=sflag, size = 0x4, scoped, tag = 'scoped memory for tpu_custom_call.1']
    #allocation12 [shape = 'u8[8192]{0}', space=vmem, size = 0x2000, scoped, tag = 'output window, operand 0']
    %10 = vsyncpa [#allocation5], 0
    %s11 = scalar_lea.sflag [#allocation5], 1
    %12 = vsyncpa %s11, 0
    %13 = vsyncpa [#allocation8], 0
    %s14 = scalar_lea.sflag [#allocation8], 1
    %15 = vsyncpa %s14, 0
    %16 = vsyncpa [#allocation11], 0
    %17 = vsyncpa [#allocation6], 0
    %s18 = scalar_lea.sflag [#allocation6], 1
    %19 = vsyncpa %s18, 0
    loop: start=0, step=1, limit=4
    $region2: #{tpu_custom_call.1} parent=1 // loop_pre_header
      _
    $region3: #{tpu_custom_call.1} parent=1 // loop_header
      %s21 = sphi 0, %s25
      %p22 = scmp.ge.s32.totalorder %s21, 4
      %s28 = sphi 0, %s47
      %s29 = sphi 0, %s43
      %s30 = sphi 0, %s39
      %s31 = sphi 0, %s28
      %s32 = sphi 0, %s29
      %s33 = sphi 0, %s30
      %s34 = sphi 0, %s31
      %s35 = sphi 0, %s32
      %s36 = sphi 0, %s33
      %s52 = sphi 0, %s54
      %s55 = sphi 0, %s52
      %s56 = sphi 0, %s55
      %s72 = sphi 0, %s56
      %s82 = sphi 0, %s84
      %s85 = sphi 0, %s82
      %s86 = sphi 0, %s85
      %s102 = sphi 0, %s86
      %s112 = sphi 0, %s114
      %s115 = sphi 0, %s112
      %s116 = sphi 0, %s115
      %s132 = sphi 0, %s116
      %s136 = sphi 0, %s136
      %s138 = sphi 0, %s136
      %s139 = sphi 0, %s138
      %s153 = sphi 0, %s139
      %s157 = sphi 0, %s157
      %s159 = sphi 0, %s157
      %s160 = sphi 0, %s159
      %s174 = sphi 0, %s160
      %s182 = sphi 0, %s184
      %s185 = sphi 0, %s182
      %s186 = sphi 0, %s185
      %s202 = sphi 0, %s186
    $region4: #{tpu_custom_call.1} parent=1 // loop_header_branch
      %24 = sbr.rel (%p22) target = $region8
    $region5: #{tpu_custom_call.1} parent=1 // loop_body
      %s26 = ssub.s32 %s21, 1
      %s27 = ssub.s32 %s21, 2
      %s37 = sadd.s32 1, %s30
      %p38 = scmp.ge.s32.totalorder %s37, 1
      %s39 = scalar_select %p38, 0, %s37
      %s40 = sadd.s32 1, %s29
      %s41 = scalar_select %p38, %s40, %s29
      %p42 = scmp.ge.s32.totalorder %s41, 1
      %s43 = scalar_select %p42, 0, %s41
      %s44 = sadd.s32 1, %s28
      %s45 = scalar_select %p42, %s44, %s28
      %p46 = scmp.ge.s32.totalorder %s45, 2
      %s47 = scalar_select %p46, 0, %s45
      %s48 = ssub.s32 %s28, %s47
      %s49 = ssub.s32 %s30, %s39
      %s50 = sor.u32 %s48, %s49
      %p51 = scmp.eq.s32.totalorder %s50, 0
      %s53 = sadd.s32 %s52, 1
      %s54 = scalar_select %p51, %s52, %s53
      %p57 = pneg %p51
      %p58 = scmp.eq.s32.totalorder %s21, 1
      %p59 = por %p57, %p58
      %p60 = scmp.ne.s32.totalorder %s52, %s55
      %p61 = scmp.eq.s32.totalorder %s21, 0
      %p62 = por %p60, %p61
      %p63 = scmp.ne.s32.totalorder %s52, %s55
      %p64 = scmp.eq.s32.totalorder %s26, 1
      %p65 = por %p63, %p64
      %p66 = scmp.ne.s32.totalorder %s55, %s56
      %p67 = scmp.eq.s32.totalorder %s26, 0
      %p68 = por %p66, %p67
      %p69 = scmp.ne.s32.totalorder %s55, %s56
      %p70 = scmp.eq.s32.totalorder %s27, 1
      %p71 = por %p69, %p70
      %p73 = scmp.ne.s32.totalorder %s56, %s72
      %p74 = scmp.eq.s32.totalorder %s27, 0
      %p75 = por %p73, %p74
      %s76 = ssub.s32 %s28, %s47
      %s77 = ssub.s32 %s29, %s43
      %s78 = sor.u32 %s76, %s77
      %s79 = ssub.s32 %s30, %s39
      %s80 = sor.u32 %s78, %s79
      %p81 = scmp.eq.s32.totalorder %s80, 0
      %s83 = sadd.s32 %s82, 1
      %s84 = scalar_select %p81, %s82, %s83
      %p87 = pneg %p81
      %p88 = scmp.eq.s32.totalorder %s21, 1
      %p89 = por %p87, %p88
      %p90 = scmp.ne.s32.totalorder %s82, %s85
      %p91 = scmp.eq.s32.totalorder %s21, 0
      %p92 = por %p90, %p91
      %p93 = scmp.ne.s32.totalorder %s82, %s85
      %p94 = scmp.eq.s32.totalorder %s26, 1
      %p95 = por %p93, %p94
      %p96 = scmp.ne.s32.totalorder %s85, %s86
      %p97 = scmp.eq.s32.totalorder %s26, 0
      %p98 = por %p96, %p97
      %p99 = scmp.ne.s32.totalorder %s85, %s86
      %p100 = scmp.eq.s32.totalorder %s27, 1
      %p101 = por %p99, %p100
      %p103 = scmp.ne.s32.totalorder %s86, %s102
      %p104 = scmp.eq.s32.totalorder %s27, 0
      %p105 = por %p103, %p104
      %s106 = ssub.s32 %s28, %s47
      %s107 = ssub.s32 %s30, %s39
      %s108 = sor.u32 %s106, %s107
      %s109 = ssub.s32 %s29, %s43
      %s110 = sor.u32 %s108, %s109
      %p111 = scmp.eq.s32.totalorder %s110, 0
      %s113 = sadd.s32 %s112, 1
      %s114 = scalar_select %p111, %s112, %s113
      %p117 = pneg %p111
      %p118 = scmp.eq.s32.totalorder %s21, 1
      %p119 = por %p117, %p118
      %p120 = scmp.ne.s32.totalorder %s112, %s115
      %p121 = scmp.eq.s32.totalorder %s21, 0
      %p122 = por %p120, %p121
      %p123 = scmp.ne.s32.totalorder %s112, %s115
      %p124 = scmp.eq.s32.totalorder %s26, 1
      %p125 = por %p123, %p124
      %p126 = scmp.ne.s32.totalorder %s115, %s116
      %p127 = scmp.eq.s32.totalorder %s26, 0
      %p128 = por %p126, %p127
      %p129 = scmp.ne.s32.totalorder %s115, %s116
      %p130 = scmp.eq.s32.totalorder %s27, 1
      %p131 = por %p129, %p130
      %p133 = scmp.ne.s32.totalorder %s116, %s132
      %p134 = scmp.eq.s32.totalorder %s27, 0
      %p135 = por %p133, %p134
      %s137 = sadd.s32 %s136, 1
      %p140 = scmp.eq.s32.totalorder %s21, 1
      %p141 = scmp.ne.s32.totalorder %s136, %s138
      %p142 = scmp.eq.s32.totalorder %s21, 0
      %p143 = por %p141, %p142
      %p144 = scmp.ne.s32.totalorder %s136, %s138
      %p145 = scmp.eq.s32.totalorder %s26, 1
      %p146 = por %p144, %p145
      %p147 = scmp.ne.s32.totalorder %s138, %s139
      %p148 = scmp.eq.s32.totalorder %s26, 0
      %p149 = por %p147, %p148
      %p150 = scmp.ne.s32.totalorder %s138, %s139
      %p151 = scmp.eq.s32.totalorder %s27, 1
      %p152 = por %p150, %p151
      %p154 = scmp.ne.s32.totalorder %s139, %s153
      %p155 = scmp.eq.s32.totalorder %s27, 0
      %p156 = por %p154, %p155
      %s158 = sadd.s32 %s157, 1
      %p161 = scmp.eq.s32.totalorder %s21, 1
      %p162 = scmp.ne.s32.totalorder %s157, %s159
      %p163 = scmp.eq.s32.totalorder %s21, 0
      %p164 = por %p162, %p163
      %p165 = scmp.ne.s32.totalorder %s157, %s159
      %p166 = scmp.eq.s32.totalorder %s26, 1
      %p167 = por %p165, %p166
      %p168 = scmp.ne.s32.totalorder %s159, %s160
      %p169 = scmp.eq.s32.totalorder %s26, 0
      %p170 = por %p168, %p169
      %p171 = scmp.ne.s32.totalorder %s159, %s160
      %p172 = scmp.eq.s32.totalorder %s27, 1
      %p173 = por %p171, %p172
      %p175 = scmp.ne.s32.totalorder %s160, %s174
      %p176 = scmp.eq.s32.totalorder %s27, 0
      %p177 = por %p175, %p176
      %s178 = ssub.s32 %s28, %s47
      %s179 = ssub.s32 %s29, %s43
      %s180 = sor.u32 %s178, %s179
      %p181 = scmp.eq.s32.totalorder %s180, 0
      %s183 = sadd.s32 %s182, 1
      %s184 = scalar_select %p181, %s182, %s183
      %p187 = pneg %p181
      %p188 = scmp.eq.s32.totalorder %s21, 1
      %p189 = por %p187, %p188
      %p190 = scmp.ne.s32.totalorder %s182, %s185
      %p191 = scmp.eq.s32.totalorder %s21, 0
      %p192 = por %p190, %p191
      %p193 = scmp.ne.s32.totalorder %s182, %s185
      %p194 = scmp.eq.s32.totalorder %s26, 1
      %p195 = por %p193, %p194
      %p196 = scmp.ne.s32.totalorder %s185, %s186
      %p197 = scmp.eq.s32.totalorder %s26, 0
      %p198 = por %p196, %p197
      %p199 = scmp.ne.s32.totalorder %s185, %s186
      %p200 = scmp.eq.s32.totalorder %s27, 1
      %p201 = por %p199, %p200
      %p203 = scmp.ne.s32.totalorder %s186, %s202
      %p204 = scmp.eq.s32.totalorder %s27, 0
      %p205 = por %p203, %p204
      %p206 = scmp.le.s32.totalorder 1, %s21
      %p207 = scmp.lt.s32.totalorder %s21, 3
      %p208 = pnand %p206, %p207
      %p209 = pneg %p208
      // Predicated region
      $region9: #{tpu_custom_call.1} parent=5 // pred_check
        _
      $region10: #{tpu_custom_call.1} parent=5 // pred_check_branch
        %211 = sbr.rel (%p208) target = $region12
      $region11: #{tpu_custom_call.1} parent=5 // pred_region
        %s212 = ssub.s32 %s21, 1
        // Predicated region
        $region13: #{tpu_custom_call.1} parent=11 // pred_check
          %p213 = pneg %p149
        $region14: #{tpu_custom_call.1} parent=11 // pred_check_branch
          %215 = sbr.rel (%p213) target = $region16
        $region15: #{tpu_custom_call.1} parent=11 // pred_region
          %s217 = ssub.s32 512, 512
          %218 = vsyncadd [#allocation11], %s217
          %s219 = sshll.u32 [#allocation10], 4
          %s220 = int_to_ptr.vmem [resolvable:$true] %s219
          %225 = dma.hbm_to_vmem [thread:$0]  %s3, 512, %s220, [#allocation11], 128, 128, 8
        $region16: #{tpu_custom_call.1} parent=11 // pred_fallthru
          _
        // Predicated region
        $region17: #{tpu_custom_call.1} parent=11 // pred_check
          %p226 = pneg %p170
        $region18: #{tpu_custom_call.1} parent=11 // pred_check_branch
          %228 = sbr.rel (%p226) target = $region20
        $region19: #{tpu_custom_call.1} parent=11 // pred_region
          _
        $region20: #{tpu_custom_call.1} parent=11 // pred_fallthru
          _
      $region12: #{tpu_custom_call.1} parent=5 // pred_fallthru
        _
      %p229 = scmp.lt.s32.totalorder %s21, 2
      // Predicated region
      $region21: #{tpu_custom_call.1} parent=5 // pred_check
        %p230 = pneg %p229
      $region22: #{tpu_custom_call.1} parent=5 // pred_check_branch
        %232 = sbr.rel (%p230) target = $region24
      $region23: #{tpu_custom_call.1} parent=5 // pred_region
        // Predicated region
        $region25: #{tpu_custom_call.1} parent=23 // pred_check
          %p233 = pneg %p62
        $region26: #{tpu_custom_call.1} parent=23 // pred_check_branch
          %235 = sbr.rel (%p233) target = $region28
        $region27: #{tpu_custom_call.1} parent=23 // pred_region
          %s236 = sand.u32 %s52, 1
          %s237 = scalar_lea.sflag [#allocation5], %s236
          %s238 = sand.u32 %s52, 1
          %s239 = smul.addr %s238, 8
          %s240 = scalar_lea.vmem [#allocation4], %s239
          %s242 = ssub.s32 128, 128
          %243 = vsyncadd %s237, %s242
          %s244 = sadd.s32 %s30, %s28
          %s245 = smul.addr %s244, 128
          %s246 = scalar_lea.hbm %s0, %s245
          %s248 = sshll.u32 %s240, 4
          %s249 = int_to_ptr.vmem [resolvable:$true] %s248
          %251 = dma.hbm_to_vmem [thread:$0]  %s246, 128, %s249, %s237
        $region28: #{tpu_custom_call.1} parent=23 // pred_fallthru
          _
        // Predicated region
        $region29: #{tpu_custom_call.1} parent=23 // pred_check
          %p252 = pneg %p92
        $region30: #{tpu_custom_call.1} parent=23 // pred_check_branch
          %254 = sbr.rel (%p252) target = $region32
        $region31: #{tpu_custom_call.1} parent=23 // pred_region
          %s255 = sand.u32 %s21, 1
          %s256 = scalar_lea.sflag [#allocation8], %s255
          %s257 = sand.u32 %s82, 1
          %s258 = smul.addr %s257, 8
          %s259 = scalar_lea.vmem [#allocation7], %s258
          %s261 = ssub.s32 128, 128
          %262 = vsyncadd %s256, %s261
          %s263 = sadd.s32 %s30, %s29
          %s264 = sadd.s32 %s263, %s28
          %s265 = smul.addr %s264, 128
          %s266 = scalar_lea.hbm %s1, %s265
          %s268 = sshll.u32 %s259, 4
          %s269 = int_to_ptr.vmem [resolvable:$true] %s268
          %271 = dma.hbm_to_vmem [thread:$0]  %s266, 128, %s269, %s256
        $region32: #{tpu_custom_call.1} parent=23 // pred_fallthru
          _
        // Predicated region
        $region33: #{tpu_custom_call.1} parent=23 // pred_check
          %p272 = pneg %p122
        $region34: #{tpu_custom_call.1} parent=23 // pred_check_branch
          %274 = sbr.rel (%p272) target = $region36
        $region35: #{tpu_custom_call.1} parent=23 // pred_region
          %s275 = sand.u32 %s21, 1
          %s276 = scalar_lea.sflag [#allocation8], %s275
          %s277 = sand.u32 %s112, 1
          %s278 = smul.addr %s277, 64
          %s279 = scalar_lea.vmem [#allocation9], %s278
          %s280 = smul.u32 8, %s30
          %s282 = ssub.s32 1024, 1024
          %283 = vsyncadd %s276, %s282
          %s284 = sadd.s32 %s29, %s280
          %s285 = smul.addr %s28, 8
          %s286 = sadd.s32 %s284, %s285
          %s287 = smul.addr %s286, 128
          %s288 = scalar_lea.hbm %s2, %s287
          %s289 = sshll.u32 %s279, 4
          %s290 = int_to_ptr.vmem [resolvable:$true] %s289
          %295 = dma.hbm_to_vmem [thread:$0]  %s288, 1024, %s290, %s276, 128, 128, 8
        $region36: #{tpu_custom_call.1} parent=23 // pred_fallthru
          _
      $region24: #{tpu_custom_call.1} parent=5 // pred_fallthru
        _
      %p296 = scmp.le.s32.totalorder 1, %s21
      %p297 = scmp.lt.s32.totalorder %s21, 3
      %p298 = pnand %p296, %p297
      %p299 = pneg %p298
      // Predicated region
      $region37: #{tpu_custom_call.1} parent=5 // pred_check
        _
      $region38: #{tpu_custom_call.1} parent=5 // pred_check_branch
        %301 = sbr.rel (%p298) target = $region40
      $region39: #{tpu_custom_call.1} parent=5 // pred_region
        %s302 = ssub.s32 %s21, 1
        %s303 = sand.u32 %s55, 1
        %s304 = scalar_lea.sflag [#allocation5], %s303
        %s305 = sand.u32 %s55, 1
        %s306 = smul.addr %s305, 8
        %s307 = scalar_lea.vmem [#allocation4], %s306
        // Predicated region
        $region41: #{tpu_custom_call.1} parent=39 // pred_check
          %p308 = pneg %p68
        $region42: #{tpu_custom_call.1} parent=39 // pred_check_branch
          %310 = sbr.rel (%p308) target = $region44
        $region43: #{tpu_custom_call.1} parent=39 // pred_region
          %311 = dma.done %s304, 128
        $region44: #{tpu_custom_call.1} parent=39 // pred_fallthru
          _
        %s312 = sand.u32 %s26, 1
        %s313 = scalar_lea.sflag [#allocation8], %s312
        %s314 = sand.u32 %s85, 1
        %s315 = smul.addr %s314, 8
        %s316 = scalar_lea.vmem [#allocation7], %s315
        // Predicated region
        $region45: #{tpu_custom_call.1} parent=39 // pred_check
          %p317 = pneg %p98
        $region46: #{tpu_custom_call.1} parent=39 // pred_check_branch
          %319 = sbr.rel (%p317) target = $region48
        $region47: #{tpu_custom_call.1} parent=39 // pred_region
          %320 = dma.done %s313, 128
        $region48: #{tpu_custom_call.1} parent=39 // pred_fallthru
          _
        %s321 = sand.u32 %s26, 1
        %s322 = scalar_lea.sflag [#allocation8], %s321
        %s323 = sand.u32 %s115, 1
        %s324 = smul.addr %s323, 64
        %s325 = scalar_lea.vmem [#allocation9], %s324
        // Predicated region
        $region49: #{tpu_custom_call.1} parent=39 // pred_check
          %p326 = pneg %p128
        $region50: #{tpu_custom_call.1} parent=39 // pred_check_branch
          %328 = sbr.rel (%p326) target = $region52
        $region51: #{tpu_custom_call.1} parent=39 // pred_region
          %329 = dma.done %s322, 1024
        $region52: #{tpu_custom_call.1} parent=39 // pred_fallthru
          _
        // Predicated region
        $region53: #{tpu_custom_call.1} parent=39 // pred_check
          %p330 = pneg %p149
        $region54: #{tpu_custom_call.1} parent=39 // pred_check_branch
          %332 = sbr.rel (%p330) target = $region56
        $region55: #{tpu_custom_call.1} parent=39 // pred_region
          %333 = dma.done [#allocation11], 512
        $region56: #{tpu_custom_call.1} parent=39 // pred_fallthru
          _
        %s334 = sand.u32 %s55, 1
        %s335 = scalar_lea.sflag [#allocation5], %s334
        %s336 = sand.u32 %s55, 1
        %s337 = smul.addr %s336, 8
        %s338 = scalar_lea.vmem [#allocation4], %s337
        %p339 = pneg %p68
        %p340 = pneg %p65
        %s341 = sand.u32 %s26, 1
        %s342 = scalar_lea.sflag [#allocation8], %s341
        %s343 = sand.u32 %s85, 1
        %s344 = smul.addr %s343, 8
        %s345 = scalar_lea.vmem [#allocation7], %s344
        %p346 = pneg %p98
        %p347 = pneg %p95
        %s348 = sand.u32 %s26, 1
        %s349 = scalar_lea.sflag [#allocation8], %s348
        %s350 = sand.u32 %s115, 1
        %s351 = smul.addr %s350, 64
        %s352 = scalar_lea.vmem [#allocation9], %s351
        %p353 = pneg %p128
        %p354 = pneg %p125
        %p355 = pneg %p149
        %p356 = pneg %p146
        %p357 = pneg %p170
        %p358 = pneg %p167
        %p359 = pneg %p198
        %p360 = pneg %p195
        %s361 = sand.u32 %s185, 1
        %s362 = scalar_lea.sflag [#allocation6], %s361
        %s363 = sand.u32 %s185, 1
        %s364 = smul.addr %s363, 8
        %s365 = scalar_lea.vmem [#allocation12], %s364
        %s366 = smul.u32 8, %s33
        %p367 = scmp.eq.s32.totalorder %s33, 0
        // Predicated region
        $region57: #{tpu_custom_call.1} parent=39 // pred_check
          %p368 = pneg %p367
        $region58: #{tpu_custom_call.1} parent=39 // pred_check_branch
          %370 = sbr.rel (%p368) target = $region60
        $region59: #{tpu_custom_call.1} parent=39 // pred_region
          %vm371 = vcmask 261120
          %372 = vst.msk [vmem:[#allocation2] sm:$0xff] %vm371, 0.0
        $region60: #{tpu_custom_call.1} parent=39 // pred_fallthru
          _
        %v373 = vld [vmem:[%s316] sm:$0xff]
        %v374 = vld [vmem:[#allocation2] sm:$0xff]
        %v375 = vld [vmem:[%s307] sm:$0xff]
        %vm376 = vcmask 64512
        %v378 = vsel %vm376, %v373, 0
        %380 = vmatprep.subr.mxu0 0.0
        %381 = vmatpush1.msra.mxu0 %v375
        %382 = vmatprep.subr.mxu0 0.0
        %383 = vmatpush1.msra.mxu0 0.0
        %384 = vmatprep.subr.mxu0 0.0
        %385 = vmatpush1.msra.mxu0 0.0
        %386 = vmatprep.subr.mxu0 0.0
        %387 = vmatpush1.msra.mxu0 0.0
        %388 = vmatprep.subr.mxu0 0.0
        %389 = vmatpush1.msra.mxu0 0.0
        %390 = vmatprep.subr.mxu0 0.0
        %391 = vmatpush1.msra.mxu0 0.0
        %392 = vmatprep.subr.mxu0 0.0
        %393 = vmatpush1.msra.mxu0 0.0
        %394 = vmatprep.subr.mxu0 0.0
        %395 = vmatpush1.msra.mxu0 0.0
        %396 = vmatprep.subr.mxu0 0.0
        %397 = vmatpush1.msra.mxu0 0.0
        %398 = vmatprep.subr.mxu0 0.0
        %399 = vmatpush1.msra.mxu0 0.0
        %400 = vmatprep.subr.mxu0 0.0
        %401 = vmatpush1.msra.mxu0 0.0
        %402 = vmatprep.subr.mxu0 0.0
        %403 = vmatpush1.msra.mxu0 0.0
        %404 = vmatprep.subr.mxu0 0.0
        %405 = vmatpush1.msra.mxu0 0.0
        %406 = vmatprep.subr.mxu0 0.0
        %407 = vmatpush1.msra.mxu0 0.0
        %408 = vmatprep.subr.mxu0 0.0
        %409 = vmatpush1.msra.mxu0 0.0
        %410 = vmatprep.subr.mxu0 0.0
        %411 = vmatpush1.msra.mxu0 0.0
        %412 = vmatprep.subr.mxu0 0.0
        %413 = vmatpush1.msra.mxu0 0.0
        %414 = vmatprep.subr.mxu0 0.0
        %415 = vmatpush1.msra.mxu0 0.0
        %416 = vmatprep.subr.mxu0 0.0
        %417 = vmatpush1.msra.mxu0 0.0
        %418 = vmatprep.subr.mxu0 0.0
        %419 = vmatpush1.msra.mxu0 0.0
        %420 = vmatprep.subr.mxu0 0.0
        %421 = vmatpush1.msra.mxu0 0.0
        %422 = vmatprep.subr.mxu0 0.0
        %423 = vmatpush1.msra.mxu0 0.0
        %424 = vmatprep.subr.mxu0 0.0
        %425 = vmatpush1.msra.mxu0 0.0
        %426 = vmatprep.subr.mxu0 0.0
        %427 = vmatpush1.msra.mxu0 0.0
        %428 = vmatprep.subr.mxu0 0.0
        %429 = vmatpush1.msra.mxu0 0.0
        %430 = vmatprep.subr.mxu0 0.0
        %431 = vmatpush1.msra.mxu0 0.0
        %432 = vmatprep.subr.mxu0 0.0
        %433 = vmatpush1.msra.mxu0 0.0
        %434 = vmatprep.subr.mxu0 0.0
        %435 = vmatpush1.msra.mxu0 0.0
        %436 = vmatprep.subr.mxu0 0.0
        %437 = vmatpush1.msra.mxu0 0.0
        %438 = vmatprep.subr.mxu0 0.0
        %439 = vmatpush1.msra.mxu0 0.0
        %440 = vmatprep.subr.mxu0 0.0
        %441 = vmatpush1.msra.mxu0 0.0
        %442 = vmatprep.subr.mxu0 0.0
        %443 = vmatpush1.msra.mxu0 0.0
        %444 = vmatprep.mubr.f32.mxu0 0.0
        %445 = vmatmul.mubr.f32.gmra.mrb[0].mxu0 %v378
        %v446 = vpop.f32.mrb[0].mxu0
        %v447 = vadd.f32 0.0, %v446
        %v448 = vpop.f32.mrb[0].mxu0
        %449 = vdwg.mxu0
        %v450 = vadd.f32 %v374, %v447
        %vm451 = vcmask 261120
        %452 = vst.msk [vmem:[#allocation2] sm:$0xff] %vm451, %v450
        %453 = vxpose.xlu0.b32.start [1/16] %v373, 128
        %454 = vxpose.xlu0.b32.cont [2/16] 0.0, 128
        %455 = vxpose.xlu0.b32.cont [3/16] 0.0, 128
        %456 = vxpose.xlu0.b32.cont [4/16] 0.0, 128
        %457 = vxpose.xlu0.b32.cont [5/16] 0.0, 128
        %458 = vxpose.xlu0.b32.cont [6/16] 0.0, 128
        %459 = vxpose.xlu0.b32.cont [7/16] 0.0, 128
        %460 = vxpose.xlu0.b32.cont [8/16] 0.0, 128
        %461 = vxpose.xlu0.b32.cont [9/16] 0.0, 128
        %462 = vxpose.xlu0.b32.cont [10/16] 0.0, 128
        %463 = vxpose.xlu0.b32.cont [11/16] 0.0, 128
        %464 = vxpose.xlu0.b32.cont [12/16] 0.0, 128
        %465 = vxpose.xlu0.b32.cont [13/16] 0.0, 128
        %466 = vxpose.xlu0.b32.cont [14/16] 0.0, 128
        %467 = vxpose.xlu0.b32.cont [15/16] 0.0, 128
        %468 = vxpose.xlu0.b32.end [16/16] 0.0, 128
        %v469 = vpop.trf.xlu0
        %v470 = vpop.trf.xlu0
        %v471 = vpop.trf.xlu0
        %v472 = vpop.trf.xlu0
        %v473 = vpop.trf.xlu0
        %v474 = vpop.trf.xlu0
        %v475 = vpop.trf.xlu0
        %v476 = vpop.trf.xlu0
        %v477 = vpop.trf.xlu0
        %v478 = vpop.trf.xlu0
        %v479 = vpop.trf.xlu0
        %v480 = vpop.trf.xlu0
        %v481 = vpop.trf.xlu0
        %v482 = vpop.trf.xlu0
        %v483 = vpop.trf.xlu0
        %v484 = vpop.trf.xlu0
        %485 = vst.msk [vmem:[#allocation3] sm:$0xff] %vm376, %v469
        %s486 = smul.u32 0, 8
        %s487 = scalar_lea.vmem %s325, %s486 [#allocation9]
        %v488 = vld [vmem:[%s487] sm:$0xff]
        %v489 = vld [vmem:[%s487 + $0x8] sm:$0xff]
        %v490 = vld [vmem:[%s487 + $0x10] sm:$0xff]
        %v491 = vld [vmem:[%s487 + $0x18] sm:$0xff]
        %v492 = vld [vmem:[%s487 + $0x20] sm:$0xff]
        %v493 = vld [vmem:[%s487 + $0x28] sm:$0xff]
        %v494 = vld [vmem:[%s487 + $0x30] sm:$0xff]
        %v495 = vld [vmem:[%s487 + $0x38] sm:$0xff]
        %v496 = vld [vmem:[#allocation3] sm:$0xff]
        %v497 = vlaneseq
        %v498 = vshrl.u32 %v497, 7
        %v499 = vsub.s32 0, %v498
        %v500 = vrot.slane %v496, %v499
        %502 = vbcast.lane.b32.xlu0 %v500, 256
        %v503 = vpop.permute.xlu0 %502
        %v504 = vlaneseq
        %v505 = vshrl.u32 %v504, 7
        %v506 = vsub.s32 1, %v505
        %v507 = vrot.slane %v496, %v506
        %509 = vbcast.lane.b32.xlu0 %v507, 256
        %v510 = vpop.permute.xlu0 %509
        %v511 = vlaneseq
        %v512 = vshrl.u32 %v511, 7
        %v513 = vsub.s32 2, %v512
        %v514 = vrot.slane %v496, %v513
        %516 = vbcast.lane.b32.xlu0 %v514, 256
        %v517 = vpop.permute.xlu0 %516
        %v518 = vlaneseq
        %v519 = vshrl.u32 %v518, 7
        %v520 = vsub.s32 3, %v519
        %v521 = vrot.slane %v496, %v520
        %523 = vbcast.lane.b32.xlu0 %v521, 256
        %v524 = vpop.permute.xlu0 %523
        %v525 = vlaneseq
        %v526 = vshrl.u32 %v525, 7
        %v527 = vsub.s32 4, %v526
        %v528 = vrot.slane %v496, %v527
        %530 = vbcast.lane.b32.xlu0 %v528, 256
        %v531 = vpop.permute.xlu0 %530
        %v532 = vlaneseq
        %v533 = vshrl.u32 %v532, 7
        %v534 = vsub.s32 5, %v533
        %v535 = vrot.slane %v496, %v534
        %537 = vbcast.lane.b32.xlu0 %v535, 256
        %v538 = vpop.permute.xlu0 %537
        %v539 = vlaneseq
        %v540 = vshrl.u32 %v539, 7
        %v541 = vsub.s32 6, %v540
        %v542 = vrot.slane %v496, %v541
        %544 = vbcast.lane.b32.xlu0 %v542, 256
        %v545 = vpop.permute.xlu0 %544
        %v546 = vlaneseq
        %v547 = vshrl.u32 %v546, 7
        %v548 = vsub.s32 7, %v547
        %v549 = vrot.slane %v496, %v548
        %551 = vbcast.lane.b32.xlu0 %v549, 256
        %v552 = vpop.permute.xlu0 %551
        %v553 = vmul.f32 %v488, %v503
        %v554 = vmul.f32 %v489, %v510
        %v555 = vmul.f32 %v490, %v517
        %v556 = vmul.f32 %v491, %v524
        %v557 = vmul.f32 %v492, %v531
        %v558 = vmul.f32 %v493, %v538
        %v559 = vmul.f32 %v494, %v545
        %v560 = vmul.f32 %v495, %v552
        %v561 = vld [vmem:[#allocation2] sm:$0xff]
        %v562 = vsel %vm451, %v553, 0.0
        %v563 = vsel %vm451, %v554, 0.0
        %v564 = vadd.f32 %v562, %v563
        %v565 = vsel %vm451, %v555, 0.0
        %v566 = vadd.f32 %v564, %v565
        %v567 = vsel %vm451, %v556, 0.0
        %v568 = vadd.f32 %v566, %v567
        %v569 = vsel %vm451, %v557, 0.0
        %v570 = vadd.f32 %v568, %v569
        %v571 = vsel %vm451, %v558, 0.0
        %v572 = vadd.f32 %v570, %v571
        %v573 = vsel %vm451, %v559, 0.0
        %v574 = vadd.f32 %v572, %v573
        %v575 = vsel %vm451, %v560, 0.0
        %v576 = vadd.f32 %v574, %v575
        %v577 = vadd.f32 %v561, %v576
        %578 = vst.msk [vmem:[#allocation2] sm:$0xff] %vm451, %v577
        // Predicated region
        $region61: #{tpu_custom_call.1} parent=39 // pred_check
          %p579 = pneg %p367
        $region62: #{tpu_custom_call.1} parent=39 // pred_check_branch
          %581 = sbr.rel (%p579) target = $region64
        $region63: #{tpu_custom_call.1} parent=39 // pred_region
          %v582 = vld [vmem:[#allocation2] sm:$0xff]
          %v583 = vld [vmem:[#allocation10] sm:$0xff]
          %v584 = vld [vmem:[#allocation10 + $0x8] sm:$0xff]
          %v585 = vld [vmem:[#allocation10 + $0x10] sm:$0xff]
          %v586 = vld [vmem:[#allocation10 + $0x18] sm:$0xff]
          %v587 = vld [vmem:[%s4] sm:$0x1]
          %v589 = vlaneseq
          %v590 = vshrl.u32 %v589, 7
          %v591 = vsub.s32 0, %v590
          %v592 = vrot.slane %v587, %v591
          %v595 = vsel %vm451, %v582, 0
          %597 = vmatprep.subr.mxu0 0.0
          %598 = vmatpush1.msra.mxu0 %v583
          %599 = vmatprep.subr.mxu0 0.0
          %600 = vmatpush1.msra.mxu0 %v584
          %601 = vmatprep.subr.mxu0 0.0
          %602 = vmatpush1.msra.mxu0 %v585
          %603 = vmatprep.subr.mxu0 0.0
          %604 = vmatpush1.msra.mxu0 %v586
          %605 = vmatprep.subr.mxu0 0.0
          %606 = vmatpush1.msra.mxu0 0.0
          %607 = vmatprep.subr.mxu0 0.0
          %608 = vmatpush1.msra.mxu0 0.0
          %609 = vmatprep.subr.mxu0 0.0
          %610 = vmatpush1.msra.mxu0 0.0
          %611 = vmatprep.subr.mxu0 0.0
          %612 = vmatpush1.msra.mxu0 0.0
          %613 = vmatprep.subr.mxu0 0.0
          %614 = vmatpush1.msra.mxu0 0.0
          %615 = vmatprep.subr.mxu0 0.0
          %616 = vmatpush1.msra.mxu0 0.0
          %617 = vmatprep.subr.mxu0 0.0
          %618 = vmatpush1.msra.mxu0 0.0
          %619 = vmatprep.subr.mxu0 0.0
          %620 = vmatpush1.msra.mxu0 0.0
          %621 = vmatprep.subr.mxu0 0.0
          %622 = vmatpush1.msra.mxu0 0.0
          %623 = vmatprep.subr.mxu0 0.0
          %624 = vmatpush1.msra.mxu0 0.0
          %625 = vmatprep.subr.mxu0 0.0
          %626 = vmatpush1.msra.mxu0 0.0
          %627 = vmatprep.subr.mxu0 0.0
          %628 = vmatpush1.msra.mxu0 0.0
          %629 = vmatprep.subr.mxu0 0.0
          %630 = vmatpush1.msra.mxu0 0.0
          %631 = vmatprep.subr.mxu0 0.0
          %632 = vmatpush1.msra.mxu0 0.0
          %633 = vmatprep.subr.mxu0 0.0
          %634 = vmatpush1.msra.mxu0 0.0
          %635 = vmatprep.subr.mxu0 0.0
          %636 = vmatpush1.msra.mxu0 0.0
          %637 = vmatprep.subr.mxu0 0.0
          %638 = vmatpush1.msra.mxu0 0.0
          %639 = vmatprep.subr.mxu0 0.0
          %640 = vmatpush1.msra.mxu0 0.0
          %641 = vmatprep.subr.mxu0 0.0
          %642 = vmatpush1.msra.mxu0 0.0
          %643 = vmatprep.subr.mxu0 0.0
          %644 = vmatpush1.msra.mxu0 0.0
          %645 = vmatprep.subr.mxu0 0.0
          %646 = vmatpush1.msra.mxu0 0.0
          %647 = vmatprep.subr.mxu0 0.0
          %648 = vmatpush1.msra.mxu0 0.0
          %649 = vmatprep.subr.mxu0 0.0
          %650 = vmatpush1.msra.mxu0 0.0
          %651 = vmatprep.subr.mxu0 0.0
          %652 = vmatpush1.msra.mxu0 0.0
          %653 = vmatprep.subr.mxu0 0.0
          %654 = vmatpush1.msra.mxu0 0.0
          %655 = vmatprep.subr.mxu0 0.0
          %656 = vmatpush1.msra.mxu0 0.0
          %657 = vmatprep.subr.mxu0 0.0
          %658 = vmatpush1.msra.mxu0 0.0
          %659 = vmatprep.subr.mxu0 0.0
          %660 = vmatpush1.msra.mxu0 0.0
          %661 = vmatprep.mubr.f32.mxu0 0.0
          %662 = vmatmul.mubr.f32.gmra.mrb[0].mxu0 %v595
          %v663 = vpop.f32.mrb[0].mxu0
          %v664 = vadd.f32 %v592, %v663
          %v665 = vpop.f32.mrb[0].mxu0
          %666 = vdwg.mxu0
          %v667 = vmax.f32 %v664, 0.0
          %668 = vst [vmem:[%s365] sm:$0xff] %v667
        $region64: #{tpu_custom_call.1} parent=39 // pred_fallthru
          _
        %s669 = sand.u32 %s185, 1
        %s670 = scalar_lea.sflag [#allocation6], %s669
        %s671 = sand.u32 %s185, 1
        %s672 = smul.addr %s671, 8
        %s673 = scalar_lea.vmem [#allocation12], %s672
        // Predicated region
        $region65: #{tpu_custom_call.1} parent=39 // pred_check
          %p674 = pneg %p195
        $region66: #{tpu_custom_call.1} parent=39 // pred_check_branch
          %676 = sbr.rel (%p674) target = $region68
        $region67: #{tpu_custom_call.1} parent=39 // pred_region
          %s678 = ssub.s32 128, 128
          %679 = vsyncadd %s670, %s678
          %s680 = sadd.s32 %s32, %s31
          %s681 = smul.addr %s680, 128
          %s682 = scalar_lea.hbm %s5, %s681
          %s684 = sshll.u32 %s673, 4
          %s685 = int_to_ptr.vmem [resolvable:$true] %s684
          %687 = dma.vmem_to_hbm [thread:$0]  %s685, 128, %s682, %s670
        $region68: #{tpu_custom_call.1} parent=39 // pred_fallthru
          _
      $region40: #{tpu_custom_call.1} parent=5 // pred_fallthru
        _
      %p688 = scmp.le.s32.totalorder 2, %s21
      // Predicated region
      $region69: #{tpu_custom_call.1} parent=5 // pred_check
        %p689 = pneg %p688
      $region70: #{tpu_custom_call.1} parent=5 // pred_check_branch
        %691 = sbr.rel (%p689) target = $region72
      $region71: #{tpu_custom_call.1} parent=5 // pred_region
        %s692 = ssub.s32 %s21, 2
        // Predicated region
        $region73: #{tpu_custom_call.1} parent=71 // pred_check
          %p693 = pneg %p201
        $region74: #{tpu_custom_call.1} parent=71 // pred_check_branch
          %695 = sbr.rel (%p693) target = $region76
        $region75: #{tpu_custom_call.1} parent=71 // pred_region
          %s696 = sand.u32 %s186, 1
          %s697 = scalar_lea.sflag [#allocation6], %s696
          %s698 = sand.u32 %s186, 1
          %s699 = smul.addr %s698, 8
          %s700 = scalar_lea.vmem [#allocation12], %s699
          %701 = dma.done %s697, 128
        $region76: #{tpu_custom_call.1} parent=71 // pred_fallthru
          _
      $region72: #{tpu_custom_call.1} parent=5 // pred_fallthru
        _
    $region6: #{tpu_custom_call.1} parent=1 // loop_footer
      %s25 = sadd.s32 1, %s21
    $region7: #{tpu_custom_call.1} parent=1 // loop_footer_branch
      %20 = sbr.rel target = $region3
    $region8: #{tpu_custom_call.1} parent=1 // loop_exit
      _
    %702 = vsyncpa [#allocation5], 1
    %s703 = scalar_lea.sflag [#allocation5], 1
    %704 = vsyncpa %s703, 1
    %705 = vsyncpa [#allocation8], 1
    %s706 = scalar_lea.sflag [#allocation8], 1
    %707 = vsyncpa %s706, 1
    %708 = vsyncpa [#allocation11], 1
    %709 = vsyncpa [#allocation6], 1
    %s710 = scalar_lea.sflag [#allocation6], 1
    %711 = vsyncpa %s710, 1

</llo_original>
